<compile_context>
chip_gen: v5e
topology: v5e:2x2
jax: 0.10.0
libtpu: 0.0.40
codegen_flags: <defaults>
</compile_context>

<pallas_src>
import functools

import jax
import jax.numpy as jnp
from jax.experimental import pallas as pl
from jax.experimental.pallas import tpu as pltpu


def _round_up(a: int, b: int) -> int:
    return (a + b - 1) // b * b


# ----------------------------------------------------------------------------
# Kernel 1: fused 2-layer MLP (Linear -> ReLU -> Linear), logits only.
# x arrives pre-cast to bf16; accumulation / elementwise stays f32.
# ----------------------------------------------------------------------------
def _mlp_kernel(x_ref, w1_ref, b1_ref, w2_ref, b2_ref, logits_ref):
    h = jnp.dot(x_ref[...], w1_ref[...], preferred_element_type=jnp.float32)
    h = jnp.maximum(h + b1_ref[...], 0.0)                       # bias + ReLU (f32, VPU)
    o = jnp.dot(h.astype(jnp.bfloat16), w2_ref[...],
                preferred_element_type=jnp.float32)
    logits_ref[...] = (o + b2_ref[...]).astype(logits_ref.dtype)


# ----------------------------------------------------------------------------
# Kernel 2: same MLP with a fused, lane-dense cross-entropy epilogue.
# CE constants (G, E, cls_row) are resident VMEM operands (hoisted out of the
# kernel).  Emits per-row sum_g (lse_g - true_logit_g), plus logits if requested.
# ----------------------------------------------------------------------------
def _mlp_ce_kernel(write_logits, num_cells,
                   x_ref, w1_ref, b1_ref, w2_ref, b2_ref,
                   labels_ref, g_ref, e_ref, cls_ref, *out_refs):
    if write_logits:
        logits_ref, ce_ref = out_refs
    else:
        (ce_ref,) = out_refs

    h = jnp.dot(x_ref[...], w1_ref[...], preferred_element_type=jnp.float32)
    h = jnp.maximum(h + b1_ref[...], 0.0)
    o = jnp.dot(h.astype(jnp.bfloat16), w2_ref[...],
                preferred_element_type=jnp.float32)
    o = o + b2_ref[...]                                          # (T, d_out_pad) f32
    if write_logits:
        logits_ref[...] = o.astype(logits_ref.dtype)

    # ---- fused cross-entropy (lane-dense; padded lanes are excluded) ----
    cls_row = cls_ref[...]                                       # (1, d_out_pad); pad lanes = -1
    real = cls_row >= 0.0                                        # (1, d_out_pad) lane validity mask

    # Row-wide max over real lanes is a valid shift for every per-cell logsumexp.
    o_real = jnp.where(real, o, -jnp.inf)                        # (T, d_out_pad)
    m_row = jnp.max(o_real, axis=-1, keepdims=True)              # (T, 1)
    p = jnp.exp(o_real - m_row)                                  # pad lanes -> exp(-inf) = 0
    esum = jnp.dot(p, g_ref[...], preferred_element_type=jnp.float32)   # (T, num_cells)
    # Guard against exp underflow of an entire cell (log(0) = -inf -> NaN loss).
    esum = jnp.maximum(esum, jnp.finfo(jnp.float32).tiny)
    lse_sum = jnp.sum(jnp.log(esum), axis=-1, keepdims=True) + num_cells * m_row

    # True-logit per cell, gathered with a one-hot lane mask.  The label->lane
    # expansion is a bf16 matmul (exact: labels and E are small integers / 0-1).
    lab_lane = jnp.dot(labels_ref[...], e_ref[...],
                       preferred_element_type=jnp.float32)       # (T, d_out_pad)
    true_sum = jnp.sum(jnp.where(cls_row == lab_lane, o, 0.0),
                       axis=-1, keepdims=True)                   # (T, 1)

    ce_ref[...] = lse_sum - true_sum                             # (T, 1) f32


# ----------------------------------------------------------------------------
# pallas_call wrappers (batch-tiled, parallel grid, weights resident)
# ----------------------------------------------------------------------------
_VMEM_LIMIT = 64 * 1024 * 1024


def _weight_specs(d_in, d_h, d_out_p):
    return [
        pl.BlockSpec((d_in, d_h), lambda i: (0, 0)),     # w1 resident (bf16)
        pl.BlockSpec((1, d_h), lambda i: (0, 0)),        # b1 resident (f32)
        pl.BlockSpec((d_h, d_out_p), lambda i: (0, 0)),  # w2 resident (bf16, lane-padded)
        pl.BlockSpec((1, d_out_p), lambda i: (0, 0)),    # b2 resident (f32, lane-padded)
    ]


def probe_mlp(x_p, w1, b1, w2, b2, *, tile):
    n_pad, d_in = x_p.shape
    d_h = w1.shape[1]
    d_out_p = w2.shape[1]
    grid = (n_pad // tile,)
    cost = pl.CostEstimate(
        flops=2 * n_pad * (d_in * d_h + d_h * d_out_p),
        transcendentals=0,
        bytes_accessed=int(x_p.size * 2 + w1.size * 2 + w2.size * 2
                           + (b1.size + b2.size) * 4
                           + n_pad * d_out_p * 4))
    in_specs = [pl.BlockSpec((tile, d_in), lambda i: (i, 0))] + _weight_specs(d_in, d_h, d_out_p)
    return pl.pallas_call(
        _mlp_kernel,
        out_shape=jax.ShapeDtypeStruct((n_pad, d_out_p), jnp.float32),
        grid=grid,
        in_specs=in_specs,
        out_specs=pl.BlockSpec((tile, d_out_p), lambda i: (i, 0)),
        compiler_params=pltpu.CompilerParams(
            dimension_semantics=("parallel",),
            vmem_limit_bytes=_VMEM_LIMIT),
        cost_estimate=cost,
    )(x_p, w1, b1, w2, b2)


def probe_mlp_ce(x_p, w1, b1, w2, b2, labels_p, G, E, cls_row, *,
                 tile, num_cells, num_classes, write_logits):
    n_pad, d_in = x_p.shape
    d_h = w1.shape[1]
    d_out_p = w2.shape[1]
    d_out = num_cells * num_classes
    grid = (n_pad // tile,)

    logits_bytes = n_pad * d_out_p * 4 if write_logits else 0
    cost = pl.CostEstimate(
        flops=2 * n_pad * (d_in * d_h + d_h * d_out_p + 2 * d_out_p * num_cells),
        transcendentals=n_pad * (d_out + num_cells),            # exp per real lane + log per cell
        bytes_accessed=int(x_p.size * 2 + w1.size * 2 + w2.size * 2
                           + (b1.size + b2.size) * 4
                           + labels_p.size * 2
                           + (G.size + cls_row.size) * 4 + E.size * 2
                           + logits_bytes + n_pad * 4))

    in_specs = [pl.BlockSpec((tile, d_in), lambda i: (i, 0))] + _weight_specs(d_in, d_h, d_out_p)
    in_specs += [
        pl.BlockSpec((tile, num_cells), lambda i: (i, 0)),       # labels tile (bf16)
        pl.BlockSpec((d_out_p, num_cells), lambda i: (0, 0)),    # G resident (f32)
        pl.BlockSpec((num_cells, d_out_p), lambda i: (0, 0)),    # E resident (bf16)
        pl.BlockSpec((1, d_out_p), lambda i: (0, 0)),            # class-of-lane row (f32)
    ]

    ce_shape = jax.ShapeDtypeStruct((n_pad, 1), jnp.float32)
    ce_spec = pl.BlockSpec((tile, 1), lambda i: (i, 0))
    if write_logits:
        out_shape = (jax.ShapeDtypeStruct((n_pad, d_out_p), jnp.float32), ce_shape)
        out_specs = [pl.BlockSpec((tile, d_out_p), lambda i: (i, 0)), ce_spec]
    else:
        out_shape = ce_shape
        out_specs = ce_spec

    kernel = functools.partial(_mlp_ce_kernel, write_logits, num_cells)
    return pl.pallas_call(
        kernel,
        out_shape=out_shape,
        grid=grid,
        in_specs=in_specs,
        out_specs=out_specs,
        compiler_params=pltpu.CompilerParams(
            dimension_semantics=("parallel",),
            vmem_limit_bytes=_VMEM_LIMIT),
        cost_estimate=cost,
    )(x_p, w1, b1, w2, b2, labels_p, G, E, cls_row)


# ----------------------------------------------------------------------------
# Module wrapper
# ----------------------------------------------------------------------------
class ClassificationProbeJax:
    def __init__(self, key, num_cells, num_classes, intermediate_dim,
                 input_dim=768, tile_n=1024):
        self.input_dim = input_dim
        self.intermediate_dim = intermediate_dim
        self.num_cells = num_cells
        self.num_classes = num_classes
        self.tile_n = tile_n
        self.d_out = num_classes * num_cells
        self.d_out_pad = _round_up(self.d_out, 128)              # lane-dense output

        k1, k2 = jax.random.split(key)
        # _init_weights: normal(mean=0, std=0.02) weights, zero biases.
        # Weights stored (in, out) and in bf16 (MXU feed); biases stay f32.
        # w2/b2 are zero-padded on the output dim up to d_out_pad lanes.
        self.w1 = (0.02 * jax.random.normal(
            k1, (input_dim, intermediate_dim))).astype(jnp.bfloat16)
        self.b1 = jnp.zeros((1, intermediate_dim), jnp.float32)
        w2_real = (0.02 * jax.random.normal(
            k2, (intermediate_dim, self.d_out))).astype(jnp.bfloat16)
        self.w2 = jnp.zeros((intermediate_dim, self.d_out_pad),
                            jnp.bfloat16).at[:, :self.d_out].set(w2_real)
        self.b2 = jnp.zeros((1, self.d_out_pad), jnp.float32)

        # Hoisted CE constants (resident VMEM operands):
        #   G[j, g] = 1 iff lane j belongs to cell g   (pad lanes -> all-zero rows)
        #   E = G^T (bf16, exact)                       (pad lanes -> all-zero cols)
        #   cls_row[0, j] = class index of lane j, -1 on pad lanes
        lane = jnp.arange(self.d_out_pad, dtype=jnp.int32)
        cell_of_lane = lane // num_classes
        self.G = (cell_of_lane[:, None] ==
                  jnp.arange(num_cells, dtype=jnp.int32)[None, :]).astype(jnp.float32)
        self.E = self.G.T.astype(jnp.bfloat16)
        self.cls_row = jnp.where(lane < self.d_out, lane % num_classes,
                                 -1).astype(jnp.float32)[None, :]

    def _choose_tile(self, n):
        tile = min(self.tile_n, _round_up(n, 8))
        tile = max(8, _round_up(tile, 8))
        # Keep the 1-D "parallel" grid at >= 2 steps when possible so both v7x
        # TensorCores get work (single-step grid leaves one TC idle).
        if n < 2 * tile and n > 8:
            tile = max(8, _round_up(pl.cdiv(n, 2), 8))
        n_pad = _round_up(n, tile)
        return tile, n_pad

    def forward(self, inputs, labels=None, *, loss_only=False):
        # Stream x in bf16 (the kernel fed the MXU in bf16 anyway); halves HBM read.
        x2d = inputs.reshape(-1, self.input_dim).astype(jnp.bfloat16)
        n = x2d.shape[0]
        tile, n_pad = self._choose_tile(n)
        x_p = x2d if n_pad == n else jnp.pad(x2d, ((0, n_pad - n), (0, 0)))

        if labels is None:
            flat = probe_mlp(x_p, self.w1, self.b1, self.w2, self.b2, tile=tile)
            logits = flat[:n, :self.d_out].reshape(-1, self.num_cells, self.num_classes)
            return logits, None

        # TODO(synk): F.cross_entropy's ignore_index=-100 is not handled (the original
        # probe never passes ignored labels); all labels contribute to the mean.
        # Labels streamed as bf16 (exact for class ids < 256).
        labels2d = labels.reshape(n, self.num_cells).astype(jnp.bfloat16)
        if n_pad != n:
            labels2d = jnp.pad(labels2d, ((0, n_pad - n), (0, 0)))

        if loss_only:
            ce_rows = probe_mlp_ce(
                x_p, self.w1, self.b1, self.w2, self.b2, labels2d,
                self.G, self.E, self.cls_row,
                tile=tile, num_cells=self.num_cells, num_classes=self.num_classes,
                write_logits=False)
            loss = jnp.sum(ce_rows[:n, 0]) / (n * self.num_cells)
            return None, loss

        flat, ce_rows = probe_mlp_ce(
            x_p, self.w1, self.b1, self.w2, self.b2, labels2d,
            self.G, self.E, self.cls_row,
            tile=tile, num_cells=self.num_cells, num_classes=self.num_classes,
            write_logits=True)
        logits = flat[:n, :self.d_out].reshape(-1, self.num_cells, self.num_classes)
        loss = jnp.sum(ce_rows[:n, 0]) / (n * self.num_cells)
        return logits, loss


# ----------------------------------------------------------------------------
# Reference (pure JAX, same bf16 weights/casts) for verification
# ----------------------------------------------------------------------------
def _ref_forward(probe, inputs, labels=None):
    x2d = inputs.reshape(-1, probe.input_dim).astype(jnp.bfloat16)
    h = jnp.dot(x2d, probe.w1, preferred_element_type=jnp.float32) + probe.b1
    h = jnp.maximum(h, 0.0)
    o = jnp.dot(h.astype(jnp.bfloat16), probe.w2,
                preferred_element_type=jnp.float32) + probe.b2
    logits = o[:, :probe.d_out].reshape(-1, probe.num_cells, probe.num_classes)
    if labels is None:
        return logits, None
    lg = logits.reshape(-1, probe.num_classes).astype(jnp.float32)
    lab = labels.reshape(-1).astype(jnp.int32)
    lse = jax.scipy.special.logsumexp(lg, axis=-1)
    true_logit = jnp.take_along_axis(lg, lab[:, None], axis=-1)[:, 0]
    return logits, jnp.mean(lse - true_logit)


if __name__ == "__main__":
    key = jax.random.PRNGKey(0)
    kp, kx, kl = jax.random.split(key, 3)

    # Small Othello-like shapes: 64 board cells, 3 classes (d_out=192 -> padded 256);
    # N=20 rows with tile_n=8 gives 3 tiles and exercises tail padding (20 -> 24).
    batch, seq = 2, 10
    input_dim = 256
    intermediate_dim = 128
    num_cells = 64
    num_classes = 3

    probe = ClassificationProbeJax(
        kp, num_cells=num_cells, num_classes=num_classes,
        intermediate_dim=intermediate_dim, input_dim=input_dim, tile_n=8)

    x = jax.random.normal(kx, (batch, seq, input_dim), jnp.float32)
    labels = jax.random.randint(kl, (batch, seq, num_cells), 0, num_classes, jnp.int32)

    # Forward without labels: (logits, None)
    logits, none_loss = probe.forward(x)
    logits = jax.block_until_ready(logits)
    assert none_loss is None
    assert logits.shape == (batch * seq, num_cells, num_classes)

    # Forward with labels: (logits, loss)
    logits_l, loss = probe.forward(x, labels)
    loss = jax.block_until_ready(loss)

    # Loss-only path (skips the logits HBM writeback)
    no_logits, loss_only = probe.forward(x, labels, loss_only=True)
    loss_only = jax.block_until_ready(loss_only)
    assert no_logits is None

    # Verify against the pure-JAX reference (same bf16 weights / casts).
    ref_logits, ref_loss = _ref_forward(probe, x, labels)
    assert jnp.allclose(logits, ref_logits, atol=2e-3, rtol=2e-3)
    assert jnp.allclose(logits_l, ref_logits, atol=2e-3, rtol=2e-3)
    assert jnp.allclose(loss, ref_loss, atol=2e-3, rtol=2e-3)
    assert jnp.allclose(loss_only, ref_loss, atol=2e-3, rtol=2e-3)

    print("KERNEL_OK")
</pallas_src>

<mosaic_0001>
module attributes {stable_mosaic.version = 11 : i64} {
  func.func @_mlp_kernel(%arg0: i32, %arg1: memref<8x256xbf16, #tpu.memory_space<vmem>>, %arg2: memref<256x128xbf16, #tpu.memory_space<vmem>>, %arg3: memref<1x128xf32, #tpu.memory_space<vmem>>, %arg4: memref<128x256xbf16, #tpu.memory_space<vmem>>, %arg5: memref<1x256xf32, #tpu.memory_space<vmem>>, %arg6: memref<8x256xf32, #tpu.memory_space<vmem>>) attributes {dimension_semantics = [#tpu.dimension_semantics<parallel>], iteration_bounds = array<i64: 3>, scalar_prefetch = 0 : i64, scratch_operands = 0 : i64, tpu.core_type = #tpu.core_type<tc>, window_params = [{transform_indices = @transform_0, window_bounds = array<i64: 8, 256>}, {pipeline_mode = #tpu.pipeline_mode<synchronous>, transform_indices = @transform_1, window_bounds = array<i64: 256, 128>}, {pipeline_mode = #tpu.pipeline_mode<synchronous>, transform_indices = @transform_2, window_bounds = array<i64: 1, 128>}, {pipeline_mode = #tpu.pipeline_mode<synchronous>, transform_indices = @transform_3, window_bounds = array<i64: 128, 256>}, {pipeline_mode = #tpu.pipeline_mode<synchronous>, transform_indices = @transform_4, window_bounds = array<i64: 1, 256>}, {transform_indices = @transform_5, window_bounds = array<i64: 8, 256>}]} {
    %c0 = arith.constant 0 : index
    %c0_0 = arith.constant 0 : index
    %0 = vector.load %arg1[%c0, %c0_0] : memref<8x256xbf16, #tpu.memory_space<vmem>>, vector<8x256xbf16>
    %c0_1 = arith.constant 0 : index
    %c0_2 = arith.constant 0 : index
    %1 = vector.load %arg2[%c0_1, %c0_2] : memref<256x128xbf16, #tpu.memory_space<vmem>>, vector<256x128xbf16>
    %cst = arith.constant dense<0.000000e+00> : vector<8x128xf32>
    %2 = tpu.matmul %0, %1, %cst {dimension_numbers = #tpu.dot_dimension_numbers<[1], [0], [0], [1], [0, 0, 1, 1], [], []>} : vector<8x256xbf16>, vector<256x128xbf16>, vector<8x128xf32> -> vector<8x128xf32>
    %c0_3 = arith.constant 0 : index
    %c0_4 = arith.constant 0 : index
    %3 = vector.load %arg3[%c0_3, %c0_4] : memref<1x128xf32, #tpu.memory_space<vmem>>, vector<1x128xf32>
    %4 = vector.broadcast %3 : vector<1x128xf32> to vector<8x128xf32>
    %5 = arith.addf %2, %4 : vector<8x128xf32>
    %cst_5 = arith.constant 0.000000e+00 : f32
    %6 = vector.broadcast %cst_5 : f32 to vector<8x128xf32>
    %7 = arith.maximumf %5, %6 : vector<8x128xf32>
    %8 = arith.truncf %7 : vector<8x128xf32> to vector<8x128xbf16>
    %c0_6 = arith.constant 0 : index
    %c0_7 = arith.constant 0 : index
    %9 = vector.load %arg4[%c0_6, %c0_7] : memref<128x256xbf16, #tpu.memory_space<vmem>>, vector<128x256xbf16>
    %cst_8 = arith.constant dense<0.000000e+00> : vector<8x256xf32>
    %10 = tpu.matmul %8, %9, %cst_8 {dimension_numbers = #tpu.dot_dimension_numbers<[1], [0], [0], [1], [0, 0, 1, 1], [], []>} : vector<8x128xbf16>, vector<128x256xbf16>, vector<8x256xf32> -> vector<8x256xf32>
    %c0_9 = arith.constant 0 : index
    %c0_10 = arith.constant 0 : index
    %11 = vector.load %arg5[%c0_9, %c0_10] : memref<1x256xf32, #tpu.memory_space<vmem>>, vector<1x256xf32>
    %12 = vector.broadcast %11 : vector<1x256xf32> to vector<8x256xf32>
    %13 = arith.addf %10, %12 : vector<8x256xf32>
    %c0_11 = arith.constant 0 : index
    %c0_12 = arith.constant 0 : index
    %14 = vector.load %arg6[%c0_11, %c0_12] : memref<8x256xf32, #tpu.memory_space<vmem>>, vector<8x256xf32>
    tpu.vector_store %arg6[%c0_11, %c0_12], %13 {strides = array<i32>} : memref<8x256xf32, #tpu.memory_space<vmem>>, vector<8x256xf32>,
    return
  }
  func.func @transform_0(%arg0: i32) -> (i32, i32) {
    %c0_i32 = arith.constant 0 : i32
    %c0_i32_0 = arith.constant 0 : i32
    return %arg0, %c0_i32 : i32, i32
  }
  func.func @transform_1(%arg0: i32) -> (i32, i32) {
    %c0_i32 = arith.constant 0 : i32
    %c0_i32_0 = arith.constant 0 : i32
    %c0_i32_1 = arith.constant 0 : i32
    return %c0_i32, %c0_i32_0 : i32, i32
  }
  func.func @transform_2(%arg0: i32) -> (i32, i32) {
    %c0_i32 = arith.constant 0 : i32
    %c0_i32_0 = arith.constant 0 : i32
    %c0_i32_1 = arith.constant 0 : i32
    return %c0_i32, %c0_i32_0 : i32, i32
  }
  func.func @transform_3(%arg0: i32) -> (i32, i32) {
    %c0_i32 = arith.constant 0 : i32
    %c0_i32_0 = arith.constant 0 : i32
    %c0_i32_1 = arith.constant 0 : i32
    return %c0_i32, %c0_i32_0 : i32, i32
  }
  func.func @transform_4(%arg0: i32) -> (i32, i32) {
    %c0_i32 = arith.constant 0 : i32
    %c0_i32_0 = arith.constant 0 : i32
    %c0_i32_1 = arith.constant 0 : i32
    return %c0_i32, %c0_i32_0 : i32, i32
  }
  func.func @transform_5(%arg0: i32) -> (i32, i32) {
    %c0_i32 = arith.constant 0 : i32
    %c0_i32_0 = arith.constant 0 : i32
    return %arg0, %c0_i32 : i32, i32
  }
}

</mosaic_0001>

<llo_original>
// kernel: tpu_custom_call.1
$region0: #{tpu_custom_call.1}
  #allocation0 [shape = 'u32[]', space=smem, size = 0x4, offset = 0x4, fixed_abs, tag = 'smem constant byte address 0x4 - core index']
  #allocation1 [shape = 'u32[72,128]{1,0:T(1,128)}', space=vmem, size = 0x9000, scoped, tag = 'internal scratch']
  %s0 = inlined_call_operand.hbm [shape: bf16[24,256], index: 0, kind: input, shape index: {}]
  %s1 = inlined_call_operand.hbm [shape: bf16[256,128], index: 1, kind: input, shape index: {}]
  %s2 = inlined_call_operand.vmem [shape: f32[1,128], index: 2, kind: input, shape index: {}]
  %s3 = inlined_call_operand.hbm [shape: bf16[128,256], index: 3, kind: input, shape index: {}]
  %s4 = inlined_call_operand.vmem [shape: f32[1,256], index: 4, kind: input, shape index: {}]
  %s5 = inlined_call_operand.hbm [shape: f32[24,256], index: 5, kind: output, shape index: {}]
  %s6 = sld [smem:[#allocation0]]
  $region65: #{tpu_custom_call.1} parent=0
    _
  %s8 = ssub.s32 1, %s6
  %s9 = scalar_select 0, %s8, %s6
  $region1: #{tpu_custom_call.1} parent=0
    #allocation2 [shape = 'u8[8192]{0}', space=vmem, size = 0x2000, scoped, tag = 'input window, operand 0']
    #allocation3 [shape = 's32[2]{0}', space=sflag, size = 0x8, scoped, tag = 'scoped memory for tpu_custom_call.1']
    #allocation4 [shape = 's32[2]{0}', space=sflag, size = 0x8, scoped, tag = 'scoped memory for tpu_custom_call.1']
    #allocation5 [shape = 'u8[65536]{0}', space=vmem, size = 0x10000, scoped, tag = 'input window, operand 1, single buffered']
    #allocation6 [shape = 's32[1]{0}', space=sflag, size = 0x4, scoped, tag = 'scoped memory for tpu_custom_call.1']
    #allocation7 [shape = 'u8[65536]{0}', space=vmem, size = 0x10000, scoped, tag = 'input window, operand 3, single buffered']
    #allocation8 [shape = 'u8[16384]{0}', space=vmem, size = 0x4000, scoped, tag = 'output window, operand 0']
    %10 = vsyncpa [#allocation3], 0
    %s11 = scalar_lea.sflag [#allocation3], 1
    %12 = vsyncpa %s11, 0
    %13 = vsyncpa [#allocation6], 0
    %14 = vsyncpa [#allocation4], 0
    %s15 = scalar_lea.sflag [#allocation4], 1
    %16 = vsyncpa %s15, 0
    loop: start=0, step=1, limit=5
    $region2: #{tpu_custom_call.1} parent=1 // loop_pre_header
      _
    $region3: #{tpu_custom_call.1} parent=1 // loop_header
      %s18 = sphi 0, %s22
      %p19 = scmp.ge.s32.totalorder %s18, 5
      %s28 = sphi 0, %s30
      %s31 = sphi 0, %s28
      %s32 = sphi 0, %s31
      %s48 = sphi 0, %s32
      %s52 = sphi 0, %s52
      %s54 = sphi 0, %s52
      %s55 = sphi 0, %s54
      %s69 = sphi 0, %s55
      %s73 = sphi 0, %s73
      %s75 = sphi 0, %s73
      %s76 = sphi 0, %s75
      %s90 = sphi 0, %s76
      %s94 = sphi 0, %s94
      %s96 = sphi 0, %s94
      %s97 = sphi 0, %s96
      %s111 = sphi 0, %s97
      %s115 = sphi 0, %s115
      %s117 = sphi 0, %s115
      %s118 = sphi 0, %s117
      %s132 = sphi 0, %s118
      %s138 = sphi 0, %s140
      %s141 = sphi 0, %s138
      %s142 = sphi 0, %s141
      %s158 = sphi 0, %s142
    $region4: #{tpu_custom_call.1} parent=1 // loop_header_branch
      %21 = sbr.rel (%p19) target = $region8
    $region5: #{tpu_custom_call.1} parent=1 // loop_body
      %s23 = ssub.s32 %s18, 1
      %s24 = ssub.s32 %s18, 2
      %s25 = sadd.s32 %s18, 1
      %s26 = ssub.s32 %s18, %s25
      %p27 = scmp.eq.s32.totalorder %s26, 0
      %s29 = sadd.s32 %s28, 1
      %s30 = scalar_select %p27, %s28, %s29
      %p33 = pneg %p27
      %p34 = scmp.eq.s32.totalorder %s18, 2
      %p35 = por %p33, %p34
      %p36 = scmp.ne.s32.totalorder %s28, %s31
      %p37 = scmp.eq.s32.totalorder %s18, 0
      %p38 = por %p36, %p37
      %p39 = scmp.ne.s32.totalorder %s28, %s31
      %p40 = scmp.eq.s32.totalorder %s23, 2
      %p41 = por %p39, %p40
      %p42 = scmp.ne.s32.totalorder %s31, %s32
      %p43 = scmp.eq.s32.totalorder %s23, 0
      %p44 = por %p42, %p43
      %p45 = scmp.ne.s32.totalorder %s31, %s32
      %p46 = scmp.eq.s32.totalorder %s24, 2
      %p47 = por %p45, %p46
      %p49 = scmp.ne.s32.totalorder %s32, %s48
      %p50 = scmp.eq.s32.totalorder %s24, 0
      %p51 = por %p49, %p50
      %s53 = sadd.s32 %s52, 1
      %p56 = scmp.eq.s32.totalorder %s18, 2
      %p57 = scmp.ne.s32.totalorder %s52, %s54
      %p58 = scmp.eq.s32.totalorder %s18, 0
      %p59 = por %p57, %p58
      %p60 = scmp.ne.s32.totalorder %s52, %s54
      %p61 = scmp.eq.s32.totalorder %s23, 2
      %p62 = por %p60, %p61
      %p63 = scmp.ne.s32.totalorder %s54, %s55
      %p64 = scmp.eq.s32.totalorder %s23, 0
      %p65 = por %p63, %p64
      %p66 = scmp.ne.s32.totalorder %s54, %s55
      %p67 = scmp.eq.s32.totalorder %s24, 2
      %p68 = por %p66, %p67
      %p70 = scmp.ne.s32.totalorder %s55, %s69
      %p71 = scmp.eq.s32.totalorder %s24, 0
      %p72 = por %p70, %p71
      %s74 = sadd.s32 %s73, 1
      %p77 = scmp.eq.s32.totalorder %s18, 2
      %p78 = scmp.ne.s32.totalorder %s73, %s75
      %p79 = scmp.eq.s32.totalorder %s18, 0
      %p80 = por %p78, %p79
      %p81 = scmp.ne.s32.totalorder %s73, %s75
      %p82 = scmp.eq.s32.totalorder %s23, 2
      %p83 = por %p81, %p82
      %p84 = scmp.ne.s32.totalorder %s75, %s76
      %p85 = scmp.eq.s32.totalorder %s23, 0
      %p86 = por %p84, %p85
      %p87 = scmp.ne.s32.totalorder %s75, %s76
      %p88 = scmp.eq.s32.totalorder %s24, 2
      %p89 = por %p87, %p88
      %p91 = scmp.ne.s32.totalorder %s76, %s90
      %p92 = scmp.eq.s32.totalorder %s24, 0
      %p93 = por %p91, %p92
      %s95 = sadd.s32 %s94, 1
      %p98 = scmp.eq.s32.totalorder %s18, 2
      %p99 = scmp.ne.s32.totalorder %s94, %s96
      %p100 = scmp.eq.s32.totalorder %s18, 0
      %p101 = por %p99, %p100
      %p102 = scmp.ne.s32.totalorder %s94, %s96
      %p103 = scmp.eq.s32.totalorder %s23, 2
      %p104 = por %p102, %p103
      %p105 = scmp.ne.s32.totalorder %s96, %s97
      %p106 = scmp.eq.s32.totalorder %s23, 0
      %p107 = por %p105, %p106
      %p108 = scmp.ne.s32.totalorder %s96, %s97
      %p109 = scmp.eq.s32.totalorder %s24, 2
      %p110 = por %p108, %p109
      %p112 = scmp.ne.s32.totalorder %s97, %s111
      %p113 = scmp.eq.s32.totalorder %s24, 0
      %p114 = por %p112, %p113
      %s116 = sadd.s32 %s115, 1
      %p119 = scmp.eq.s32.totalorder %s18, 2
      %p120 = scmp.ne.s32.totalorder %s115, %s117
      %p121 = scmp.eq.s32.totalorder %s18, 0
      %p122 = por %p120, %p121
      %p123 = scmp.ne.s32.totalorder %s115, %s117
      %p124 = scmp.eq.s32.totalorder %s23, 2
      %p125 = por %p123, %p124
      %p126 = scmp.ne.s32.totalorder %s117, %s118
      %p127 = scmp.eq.s32.totalorder %s23, 0
      %p128 = por %p126, %p127
      %p129 = scmp.ne.s32.totalorder %s117, %s118
      %p130 = scmp.eq.s32.totalorder %s24, 2
      %p131 = por %p129, %p130
      %p133 = scmp.ne.s32.totalorder %s118, %s132
      %p134 = scmp.eq.s32.totalorder %s24, 0
      %p135 = por %p133, %p134
      %s136 = ssub.s32 %s18, %s25
      %p137 = scmp.eq.s32.totalorder %s136, 0
      %s139 = sadd.s32 %s138, 1
      %s140 = scalar_select %p137, %s138, %s139
      %p143 = pneg %p137
      %p144 = scmp.eq.s32.totalorder %s18, 2
      %p145 = por %p143, %p144
      %p146 = scmp.ne.s32.totalorder %s138, %s141
      %p147 = scmp.eq.s32.totalorder %s18, 0
      %p148 = por %p146, %p147
      %p149 = scmp.ne.s32.totalorder %s138, %s141
      %p150 = scmp.eq.s32.totalorder %s23, 2
      %p151 = por %p149, %p150
      %p152 = scmp.ne.s32.totalorder %s141, %s142
      %p153 = scmp.eq.s32.totalorder %s23, 0
      %p154 = por %p152, %p153
      %p155 = scmp.ne.s32.totalorder %s141, %s142
      %p156 = scmp.eq.s32.totalorder %s24, 2
      %p157 = por %p155, %p156
      %p159 = scmp.ne.s32.totalorder %s142, %s158
      %p160 = scmp.eq.s32.totalorder %s24, 0
      %p161 = por %p159, %p160
      %p162 = scmp.le.s32.totalorder 1, %s18
      %p163 = scmp.lt.s32.totalorder %s18, 4
      %p164 = pnand %p162, %p163
      %p165 = pneg %p164
      // Predicated region
      $region9: #{tpu_custom_call.1} parent=5 // pred_check
        _
      $region10: #{tpu_custom_call.1} parent=5 // pred_check_branch
        %167 = sbr.rel (%p164) target = $region12
      $region11: #{tpu_custom_call.1} parent=5 // pred_region
        %s168 = ssub.s32 %s18, 1
        // Predicated region
        $region13: #{tpu_custom_call.1} parent=11 // pred_check
          %p169 = pneg %p65
        $region14: #{tpu_custom_call.1} parent=11 // pred_check_branch
          %171 = sbr.rel (%p169) target = $region16
        $region15: #{tpu_custom_call.1} parent=11 // pred_region
          %173 = vsyncadd [#allocation6], 0
          %s174 = sshll.u32 %s1, 4
          %s175 = int_to_ptr.hbm [resolvable:$true] %s174
          %s176 = sshll.u32 [#allocation5], 4
          %s177 = int_to_ptr.vmem [resolvable:$true] %s176
          %182 = dma.hbm_to_vmem [thread:$0]  %s175, 2048, %s177, [#allocation6], 64, 64, 4
        $region16: #{tpu_custom_call.1} parent=11 // pred_fallthru
          _
        // Predicated region
        $region17: #{tpu_custom_call.1} parent=11 // pred_check
          %p183 = pneg %p86
        $region18: #{tpu_custom_call.1} parent=11 // pred_check_branch
          %185 = sbr.rel (%p183) target = $region20
        $region19: #{tpu_custom_call.1} parent=11 // pred_region
          _
        $region20: #{tpu_custom_call.1} parent=11 // pred_fallthru
          _
        // Predicated region
        $region21: #{tpu_custom_call.1} parent=11 // pred_check
          %p186 = pneg %p107
        $region22: #{tpu_custom_call.1} parent=11 // pred_check_branch
          %188 = sbr.rel (%p186) target = $region24
        $region23: #{tpu_custom_call.1} parent=11 // pred_region
          %190 = vsyncadd [#allocation6], 0
          %s191 = sshll.u32 %s3, 4
          %s192 = int_to_ptr.hbm [resolvable:$true] %s191
          %s193 = sshll.u32 [#allocation7], 4
          %s194 = int_to_ptr.vmem [resolvable:$true] %s193
          %199 = dma.hbm_to_vmem [thread:$0]  %s192, 2048, %s194, [#allocation6], 128, 128, 8
        $region24: #{tpu_custom_call.1} parent=11 // pred_fallthru
          _
        // Predicated region
        $region25: #{tpu_custom_call.1} parent=11 // pred_check
          %p200 = pneg %p128
        $region26: #{tpu_custom_call.1} parent=11 // pred_check_branch
          %202 = sbr.rel (%p200) target = $region28
        $region27: #{tpu_custom_call.1} parent=11 // pred_region
          _
        $region28: #{tpu_custom_call.1} parent=11 // pred_fallthru
          _
      $region12: #{tpu_custom_call.1} parent=5 // pred_fallthru
        _
      %p203 = scmp.lt.s32.totalorder %s18, 3
      // Predicated region
      $region29: #{tpu_custom_call.1} parent=5 // pred_check
        %p204 = pneg %p203
      $region30: #{tpu_custom_call.1} parent=5 // pred_check_branch
        %206 = sbr.rel (%p204) target = $region32
      $region31: #{tpu_custom_call.1} parent=5 // pred_region
        // Predicated region
        $region33: #{tpu_custom_call.1} parent=31 // pred_check
          %p207 = pneg %p38
        $region34: #{tpu_custom_call.1} parent=31 // pred_check_branch
          %209 = sbr.rel (%p207) target = $region36
        $region35: #{tpu_custom_call.1} parent=31 // pred_region
          %s210 = sand.u32 %s28, 1
          %s211 = scalar_lea.sflag [#allocation3], %s210
          %s212 = sand.u32 %s28, 1
          %s213 = smul.addr %s212, 8
          %s214 = scalar_lea.vmem [#allocation2], %s213
          %216 = vsyncadd %s211, 0
          %s217 = smul.addr %s18, 2
          %s218 = smul.addr %s217, 4
          %s219 = scalar_lea.hbm %s0, %s218
          %s221 = sshll.u32 %s219, 4
          %s222 = int_to_ptr.hbm [resolvable:$true] %s221
          %s223 = sshll.u32 %s214, 4
          %s224 = int_to_ptr.vmem [resolvable:$true] %s223
          %226 = dma.hbm_to_vmem [thread:$0]  %s222, 128, %s224, %s211
        $region36: #{tpu_custom_call.1} parent=31 // pred_fallthru
          _
      $region32: #{tpu_custom_call.1} parent=5 // pred_fallthru
        _
      %p227 = scmp.le.s32.totalorder 1, %s18
      %p228 = scmp.lt.s32.totalorder %s18, 4
      %p229 = pnand %p227, %p228
      %p230 = pneg %p229
      // Predicated region
      $region37: #{tpu_custom_call.1} parent=5 // pred_check
        _
      $region38: #{tpu_custom_call.1} parent=5 // pred_check_branch
        %232 = sbr.rel (%p229) target = $region40
      $region39: #{tpu_custom_call.1} parent=5 // pred_region
        %s233 = ssub.s32 %s18, 1
        %s234 = sand.u32 %s31, 1
        %s235 = scalar_lea.sflag [#allocation3], %s234
        %s236 = sand.u32 %s31, 1
        %s237 = smul.addr %s236, 8
        %s238 = scalar_lea.vmem [#allocation2], %s237
        // Predicated region
        $region41: #{tpu_custom_call.1} parent=39 // pred_check
          %p239 = pneg %p44
        $region42: #{tpu_custom_call.1} parent=39 // pred_check_branch
          %241 = sbr.rel (%p239) target = $region44
        $region43: #{tpu_custom_call.1} parent=39 // pred_region
          %243 = dma.done %s235, 128
        $region44: #{tpu_custom_call.1} parent=39 // pred_fallthru
          _
        // Predicated region
        $region45: #{tpu_custom_call.1} parent=39 // pred_check
          %p244 = pneg %p65
        $region46: #{tpu_custom_call.1} parent=39 // pred_check_branch
          %246 = sbr.rel (%p244) target = $region48
        $region47: #{tpu_custom_call.1} parent=39 // pred_region
          %248 = dma.done [#allocation6], 2048
        $region48: #{tpu_custom_call.1} parent=39 // pred_fallthru
          _
        // Predicated region
        $region49: #{tpu_custom_call.1} parent=39 // pred_check
          %p249 = pneg %p107
        $region50: #{tpu_custom_call.1} parent=39 // pred_check_branch
          %251 = sbr.rel (%p249) target = $region52
        $region51: #{tpu_custom_call.1} parent=39 // pred_region
          %253 = dma.done [#allocation6], 2048
        $region52: #{tpu_custom_call.1} parent=39 // pred_fallthru
          _
        %s254 = sand.u32 %s31, 1
        %s255 = scalar_lea.sflag [#allocation3], %s254
        %s256 = sand.u32 %s31, 1
        %s257 = smul.addr %s256, 8
        %s258 = scalar_lea.vmem [#allocation2], %s257
        %p259 = pneg %p44
        %p260 = pneg %p41
        %p261 = pneg %p65
        %p262 = pneg %p62
        %p263 = pneg %p86
        %p264 = pneg %p83
        %p265 = pneg %p107
        %p266 = pneg %p104
        %p267 = pneg %p128
        %p268 = pneg %p125
        %p269 = pneg %p154
        %p270 = pneg %p151
        %s271 = sand.u32 %s141, 1
        %s272 = scalar_lea.sflag [#allocation4], %s271
        %s273 = sand.u32 %s141, 1
        %s274 = smul.addr %s273, 16
        %s275 = scalar_lea.vmem [#allocation8], %s274
        %v276 = vld [vmem:[%s238] sm:$0xff]
        %v277 = vld [vmem:[#allocation5] sm:$0xf]
        %v278 = vld [vmem:[#allocation5 + $0x4] sm:$0xf]
        %v279 = vld [vmem:[#allocation5 + $0x8] sm:$0xf]
        %v280 = vld [vmem:[#allocation5 + $0xc] sm:$0xf]
        %v281 = vld [vmem:[#allocation5 + $0x10] sm:$0xf]
        %v282 = vld [vmem:[#allocation5 + $0x14] sm:$0xf]
        %v283 = vld [vmem:[#allocation5 + $0x18] sm:$0xf]
        %v284 = vld [vmem:[#allocation5 + $0x1c] sm:$0xf]
        %v285 = vld [vmem:[#allocation5 + $0x20] sm:$0xf]
        %v286 = vld [vmem:[#allocation5 + $0x24] sm:$0xf]
        %v287 = vld [vmem:[#allocation5 + $0x28] sm:$0xf]
        %v288 = vld [vmem:[#allocation5 + $0x2c] sm:$0xf]
        %v289 = vld [vmem:[#allocation5 + $0x30] sm:$0xf]
        %v290 = vld [vmem:[#allocation5 + $0x34] sm:$0xf]
        %v291 = vld [vmem:[#allocation5 + $0x38] sm:$0xf]
        %v292 = vld [vmem:[#allocation5 + $0x3c] sm:$0xf]
        %v293 = vld [vmem:[#allocation5 + $0x40] sm:$0xf]
        %v294 = vld [vmem:[#allocation5 + $0x44] sm:$0xf]
        %v295 = vld [vmem:[#allocation5 + $0x48] sm:$0xf]
        %v296 = vld [vmem:[#allocation5 + $0x4c] sm:$0xf]
        %v297 = vld [vmem:[#allocation5 + $0x50] sm:$0xf]
        %v298 = vld [vmem:[#allocation5 + $0x54] sm:$0xf]
        %v299 = vld [vmem:[#allocation5 + $0x58] sm:$0xf]
        %v300 = vld [vmem:[#allocation5 + $0x5c] sm:$0xf]
        %v301 = vld [vmem:[#allocation5 + $0x60] sm:$0xf]
        %v302 = vld [vmem:[#allocation5 + $0x64] sm:$0xf]
        %v303 = vld [vmem:[#allocation5 + $0x68] sm:$0xf]
        %v304 = vld [vmem:[#allocation5 + $0x6c] sm:$0xf]
        %v305 = vld [vmem:[#allocation5 + $0x70] sm:$0xf]
        %v306 = vld [vmem:[#allocation5 + $0x74] sm:$0xf]
        %v307 = vld [vmem:[#allocation5 + $0x78] sm:$0xf]
        %v308 = vld [vmem:[#allocation5 + $0x7c] sm:$0xf]
        %v309 = vld [vmem:[%s2] sm:$0x1]
        %v311 = vperm.slane %v309, 0
        %v314 = vunpack.c.l.b16 %v276
        %v315 = vunpack.c.h.b16 %v276
        %v316 = vpack.c.b16 %v314, %v314
        %v317 = vpack.c.b16 %v315, %v315
        %v352 = vunpack.c.l.b16 %v277
        %v353 = vunpack.c.l.b16 %v278
        %v354 = vunpack.c.l.b16 %v279
        %v355 = vunpack.c.l.b16 %v280
        %v356 = vunpack.c.l.b16 %v281
        %v357 = vunpack.c.l.b16 %v282
        %v358 = vunpack.c.l.b16 %v283
        %v359 = vunpack.c.l.b16 %v284
        %v360 = vunpack.c.l.b16 %v285
        %v361 = vunpack.c.l.b16 %v286
        %v362 = vunpack.c.l.b16 %v287
        %v363 = vunpack.c.l.b16 %v288
        %v364 = vunpack.c.l.b16 %v289
        %v365 = vunpack.c.l.b16 %v290
        %v366 = vunpack.c.l.b16 %v291
        %v367 = vunpack.c.l.b16 %v292
        %v368 = vunpack.c.l.b16 %v293
        %v369 = vunpack.c.l.b16 %v294
        %v370 = vunpack.c.l.b16 %v295
        %v371 = vunpack.c.l.b16 %v296
        %v372 = vunpack.c.l.b16 %v297
        %v373 = vunpack.c.l.b16 %v298
        %v374 = vunpack.c.l.b16 %v299
        %v375 = vunpack.c.l.b16 %v300
        %v376 = vunpack.c.l.b16 %v301
        %v377 = vunpack.c.l.b16 %v302
        %v378 = vunpack.c.l.b16 %v303
        %v379 = vunpack.c.l.b16 %v304
        %v380 = vunpack.c.l.b16 %v305
        %v381 = vunpack.c.l.b16 %v306
        %v382 = vunpack.c.l.b16 %v307
        %v383 = vunpack.c.l.b16 %v308
        %v384 = vpack.c.b16 %v353, %v352
        %v385 = vpack.c.b16 %v355, %v354
        %v386 = vpack.c.b16 %v357, %v356
        %v387 = vpack.c.b16 %v359, %v358
        %v388 = vpack.c.b16 %v361, %v360
        %v389 = vpack.c.b16 %v363, %v362
        %v390 = vpack.c.b16 %v365, %v364
        %v391 = vpack.c.b16 %v367, %v366
        %v392 = vpack.c.b16 %v369, %v368
        %v393 = vpack.c.b16 %v371, %v370
        %v394 = vpack.c.b16 %v373, %v372
        %v395 = vpack.c.b16 %v375, %v374
        %v396 = vpack.c.b16 %v377, %v376
        %v397 = vpack.c.b16 %v379, %v378
        %v398 = vpack.c.b16 %v381, %v380
        %v399 = vpack.c.b16 %v383, %v382
        %416 = vmatpush.bf16.msra.mxu0 %v391
        %417 = vmatpush.bf16.msra.mxu0 %v390
        %418 = vmatpush.bf16.msra.mxu0 %v389
        %419 = vmatpush.bf16.msra.mxu0 %v388
        %420 = vmatpush.bf16.msra.mxu0 %v387
        %421 = vmatpush.bf16.msra.mxu0 %v386
        %422 = vmatpush.bf16.msra.mxu0 %v385
        %423 = vmatpush.bf16.msra.mxu0 %v384
        %424 = vmatmul.bf16.gmra.mxu0 %v316
        %v425 = vpop.f32.mrf.mxu0
        %v426 = vadd.f32 %v311, %v425
        %v427 = vpop.f32.mrf.mxu0
        %428 = vdwg.mxu0
        %429 = vmatpush.bf16.msra.mxu0 %v399
        %430 = vmatpush.bf16.msra.mxu0 %v398
        %431 = vmatpush.bf16.msra.mxu0 %v397
        %432 = vmatpush.bf16.msra.mxu0 %v396
        %433 = vmatpush.bf16.msra.mxu0 %v395
        %434 = vmatpush.bf16.msra.mxu0 %v394
        %435 = vmatpush.bf16.msra.mxu0 %v393
        %436 = vmatpush.bf16.msra.mxu0 %v392
        %437 = vmatmul.bf16.gmra.mxu0 %v317
        %v438 = vpop.f32.mrf.mxu0
        %v439 = vadd.f32 %v426, %v438
        %v440 = vpop.f32.mrf.mxu0
        %441 = vdwg.mxu0
        %v442 = vmax.f32 %v439, 0.0
        %v443 = vpack.c.bf16 %v442, %v442
        %v444 = vld [vmem:[#allocation7] sm:$0xff]
        %v445 = vld [vmem:[#allocation7 + $0x8] sm:$0xff]
        %v446 = vld [vmem:[#allocation7 + $0x10] sm:$0xff]
        %v447 = vld [vmem:[#allocation7 + $0x18] sm:$0xff]
        %v448 = vld [vmem:[#allocation7 + $0x20] sm:$0xff]
        %v449 = vld [vmem:[#allocation7 + $0x28] sm:$0xff]
        %v450 = vld [vmem:[#allocation7 + $0x30] sm:$0xff]
        %v451 = vld [vmem:[#allocation7 + $0x38] sm:$0xff]
        %v452 = vld [vmem:[#allocation7 + $0x40] sm:$0xff]
        %v453 = vld [vmem:[#allocation7 + $0x48] sm:$0xff]
        %v454 = vld [vmem:[#allocation7 + $0x50] sm:$0xff]
        %v455 = vld [vmem:[#allocation7 + $0x58] sm:$0xff]
        %v456 = vld [vmem:[#allocation7 + $0x60] sm:$0xff]
        %v457 = vld [vmem:[#allocation7 + $0x68] sm:$0xff]
        %v458 = vld [vmem:[#allocation7 + $0x70] sm:$0xff]
        %v459 = vld [vmem:[#allocation7 + $0x78] sm:$0xff]
        %v460 = vld [vmem:[%s4] sm:$0x3]
        %v462 = vperm.slane %v460, 0
        %v463 = vperm.slane %v460, 1
        %v482 = vunpack.c.l.b16 %v444
        %v483 = vunpack.c.h.b16 %v444
        %v484 = vunpack.c.l.b16 %v445
        %v485 = vunpack.c.h.b16 %v445
        %v486 = vunpack.c.l.b16 %v446
        %v487 = vunpack.c.h.b16 %v446
        %v488 = vunpack.c.l.b16 %v447
        %v489 = vunpack.c.h.b16 %v447
        %v490 = vunpack.c.l.b16 %v448
        %v491 = vunpack.c.h.b16 %v448
        %v492 = vunpack.c.l.b16 %v449
        %v493 = vunpack.c.h.b16 %v449
        %v494 = vunpack.c.l.b16 %v450
        %v495 = vunpack.c.h.b16 %v450
        %v496 = vunpack.c.l.b16 %v451
        %v497 = vunpack.c.h.b16 %v451
        %v498 = vunpack.c.l.b16 %v452
        %v499 = vunpack.c.h.b16 %v452
        %v500 = vunpack.c.l.b16 %v453
        %v501 = vunpack.c.h.b16 %v453
        %v502 = vunpack.c.l.b16 %v454
        %v503 = vunpack.c.h.b16 %v454
        %v504 = vunpack.c.l.b16 %v455
        %v505 = vunpack.c.h.b16 %v455
        %v506 = vunpack.c.l.b16 %v456
        %v507 = vunpack.c.h.b16 %v456
        %v508 = vunpack.c.l.b16 %v457
        %v509 = vunpack.c.h.b16 %v457
        %v510 = vunpack.c.l.b16 %v458
        %v511 = vunpack.c.h.b16 %v458
        %v512 = vunpack.c.l.b16 %v459
        %v513 = vunpack.c.h.b16 %v459
        %v514 = vpack.c.b16 %v484, %v482
        %v515 = vpack.c.b16 %v485, %v483
        %v516 = vpack.c.b16 %v488, %v486
        %v517 = vpack.c.b16 %v489, %v487
        %v518 = vpack.c.b16 %v492, %v490
        %v519 = vpack.c.b16 %v493, %v491
        %v520 = vpack.c.b16 %v496, %v494
        %v521 = vpack.c.b16 %v497, %v495
        %v522 = vpack.c.b16 %v500, %v498
        %v523 = vpack.c.b16 %v501, %v499
        %v524 = vpack.c.b16 %v504, %v502
        %v525 = vpack.c.b16 %v505, %v503
        %v526 = vpack.c.b16 %v508, %v506
        %v527 = vpack.c.b16 %v509, %v507
        %v528 = vpack.c.b16 %v512, %v510
        %v529 = vpack.c.b16 %v513, %v511
        %546 = vmatpush.bf16.msra.mxu0 %v528
        %547 = vmatpush.bf16.msra.mxu0 %v526
        %548 = vmatpush.bf16.msra.mxu0 %v524
        %549 = vmatpush.bf16.msra.mxu0 %v522
        %550 = vmatpush.bf16.msra.mxu0 %v520
        %551 = vmatpush.bf16.msra.mxu0 %v518
        %552 = vmatpush.bf16.msra.mxu0 %v516
        %553 = vmatpush.bf16.msra.mxu0 %v514
        %554 = vmatmul.bf16.gmra.mxu0 %v443
        %v555 = vpop.f32.mrf.mxu0
        %v556 = vadd.f32 %v462, %v555
        %v557 = vpop.f32.mrf.mxu0
        %558 = vdwg.mxu0
        %559 = vmatpush.bf16.msra.mxu0 %v529
        %560 = vmatpush.bf16.msra.mxu0 %v527
        %561 = vmatpush.bf16.msra.mxu0 %v525
        %562 = vmatpush.bf16.msra.mxu0 %v523
        %563 = vmatpush.bf16.msra.mxu0 %v521
        %564 = vmatpush.bf16.msra.mxu0 %v519
        %565 = vmatpush.bf16.msra.mxu0 %v517
        %566 = vmatpush.bf16.msra.mxu0 %v515
        %567 = vmatmul.bf16.gmra.mxu0 %v443
        %v568 = vpop.f32.mrf.mxu0
        %v569 = vadd.f32 %v463, %v568
        %v570 = vpop.f32.mrf.mxu0
        %571 = vdwg.mxu0
        %572 = vst [vmem:[%s275] sm:$0xff] %v556
        %573 = vst [vmem:[%s275 + $0x8] sm:$0xff] %v569
        %s574 = sand.u32 %s141, 1
        %s575 = scalar_lea.sflag [#allocation4], %s574
        %s576 = sand.u32 %s141, 1
        %s577 = smul.addr %s576, 16
        %s578 = scalar_lea.vmem [#allocation8], %s577
        // Predicated region
        $region53: #{tpu_custom_call.1} parent=39 // pred_check
          %p579 = pneg %p151
        $region54: #{tpu_custom_call.1} parent=39 // pred_check_branch
          %581 = sbr.rel (%p579) target = $region56
        $region55: #{tpu_custom_call.1} parent=39 // pred_region
          %583 = vsyncadd %s575, 0
          %s584 = smul.addr %s23, 2
          %s585 = smul.addr %s584, 8
          %s586 = scalar_lea.hbm %s5, %s585
          %s588 = sshll.u32 %s578, 4
          %s589 = int_to_ptr.vmem [resolvable:$true] %s588
          %s590 = sshll.u32 %s586, 4
          %s591 = int_to_ptr.hbm [resolvable:$true] %s590
          %593 = dma.vmem_to_hbm [thread:$0]  %s589, 256, %s591, %s575
        $region56: #{tpu_custom_call.1} parent=39 // pred_fallthru
          _
      $region40: #{tpu_custom_call.1} parent=5 // pred_fallthru
        _
      %p594 = scmp.le.s32.totalorder 2, %s18
      // Predicated region
      $region57: #{tpu_custom_call.1} parent=5 // pred_check
        %p595 = pneg %p594
      $region58: #{tpu_custom_call.1} parent=5 // pred_check_branch
        %597 = sbr.rel (%p595) target = $region60
      $region59: #{tpu_custom_call.1} parent=5 // pred_region
        %s598 = ssub.s32 %s18, 2
        // Predicated region
        $region61: #{tpu_custom_call.1} parent=59 // pred_check
          %p599 = pneg %p157
        $region62: #{tpu_custom_call.1} parent=59 // pred_check_branch
          %601 = sbr.rel (%p599) target = $region64
        $region63: #{tpu_custom_call.1} parent=59 // pred_region
          %s602 = sand.u32 %s142, 1
          %s603 = scalar_lea.sflag [#allocation4], %s602
          %s604 = sand.u32 %s142, 1
          %s605 = smul.addr %s604, 16
          %s606 = scalar_lea.vmem [#allocation8], %s605
          %608 = dma.done %s603, 256
        $region64: #{tpu_custom_call.1} parent=59 // pred_fallthru
          _
      $region60: #{tpu_custom_call.1} parent=5 // pred_fallthru
        _
    $region6: #{tpu_custom_call.1} parent=1 // loop_footer
      %s22 = sadd.s32 1, %s18
    $region7: #{tpu_custom_call.1} parent=1 // loop_footer_branch
      %17 = sbr.rel target = $region3
    $region8: #{tpu_custom_call.1} parent=1 // loop_exit
      _
    %609 = vsyncpa [#allocation3], 1
    %s610 = scalar_lea.sflag [#allocation3], 1
    %611 = vsyncpa %s610, 1
    %612 = vsyncpa [#allocation6], 1
    %613 = vsyncpa [#allocation4], 1
    %s614 = scalar_lea.sflag [#allocation4], 1
    %615 = vsyncpa %s614, 1

</llo_original>
